<compile_context>
chip_gen: v7x
topology: tpu7x:2x2x1
jax: 0.10.0
libtpu: 0.0.40
codegen_flags: <defaults>
</compile_context>

<pallas_src>
import functools

import jax
import jax.numpy as jnp
from jax import lax
from jax.experimental import pallas as pl
from jax.experimental.pallas import tpu as pltpu


def _int_pow(x, g):
    """x**g for small non-negative integer g, as an unrolled multiply chain."""
    g = int(g)
    if g == 0:
        return jnp.ones_like(x)
    result = None
    base = x
    while g > 0:
        if g & 1:
            result = base if result is None else result * base
        g >>= 1
        if g > 0:
            base = base * base
    return result


def _focal_loss_kernel(x_ref, t_ref, at_ref, out_ref, *,
                       gamma, n_total, tile_n, reduce_tile):
    x = x_ref[...].astype(jnp.float32)      # (TN, C)  bf16 inputs upcast here
    t = t_ref[...]                          # (TN, 1)  int32 target class
    at = at_ref[...]                        # (TN, 1)  f32 alpha[target]

    # Numerically stable softmax pieces (single exp over the tile).
    m = jnp.max(x, axis=-1, keepdims=True)              # (TN, 1)
    z = x - m                                           # (TN, C)
    e = jnp.exp(z)                                      # (TN, C)
    sum_e = jnp.sum(e, axis=-1, keepdims=True)          # (TN, 1)

    # Target gather via iota compare + where (no cast, no extra multiply).
    cls = lax.broadcasted_iota(jnp.int32, x.shape, 1)   # (TN, C)
    sel = cls == t                                      # (TN, C) bool
    z_t = jnp.sum(jnp.where(sel, z, 0.0), axis=-1, keepdims=True)   # (TN, 1)

    # Per-sample cross entropy and target probability.
    logpt = jnp.log(sum_e) - z_t                                    # (TN, 1)
    pt = jnp.exp(z_t) * pl.reciprocal(sum_e, approx=False)          # (TN, 1)

    one_minus_pt = jnp.maximum(1.0 - pt, 0.0)   # clamp f32 rounding (pt ~ 1+ulp)
    if float(gamma) == int(gamma) and gamma >= 0:
        focal = _int_pow(one_minus_pt, int(gamma))      # pure VALU, exact at pt==1
    else:
        # Float gamma: clamp so pt == 1 does not produce log(0) -> NaN.
        focal = jnp.exp(gamma * jnp.log(jnp.maximum(one_minus_pt, 1e-20)))

    loss = focal * (at * logpt)                                     # (TN, 1)

    # Zero any rows past the true batch size (ragged last tile reads garbage);
    # must happen AFTER the loss is formed so inf/NaN in garbage rows dies here.
    row = pl.program_id(0) * tile_n + lax.broadcasted_iota(jnp.int32, loss.shape, 0)
    loss = jnp.where(row < n_total, loss, 0.0)

    if reduce_tile:
        # One tiny store per grid step instead of N per-row losses.
        out_ref[...] = jnp.sum(loss, keepdims=True).reshape(1, 1, 1)
    else:
        # Lane-dense store: (TN, 1) column -> (TN,) row along lanes.
        out_ref[0, 0, :] = loss[:, 0]


def _round_up(x, m):
    return ((x + m - 1) // m) * m


def _vmem_capacity_bytes():
    try:
        cap = int(pltpu.get_tpu_info().vmem_capacity_bytes)
        if cap > 0:
            return cap
    except Exception:
        pass
    return 128 * 1024 * 1024   # v5e/v6e default if query unavailable


def _pick_tile_n(n, c, itemsize, row_align):
    vmem_cap = _vmem_capacity_bytes()
    # Working-set budget, not just the DMA tile: double-buffered logits blocks,
    # ~4 live (rows, C) f32 temporaries, lane-padded (rows, 128) aux blocks.
    budget = max(12 << 20, min(vmem_cap // 3, 40 << 20))
    per_row = 2 * c * itemsize + 4 * c * 4 + 4 * 128 * 4
    rows = budget // max(1, per_row)
    rows = max(row_align, min(2048, int(rows)))
    rows = min(rows, _round_up(n, row_align))
    # Keep >= 2 grid steps when possible so the "parallel" axis can actually
    # split the batch across v7x's two TensorCores.
    if n > row_align:
        rows = min(rows, _round_up(-(-n // 2), row_align))
    rows = max(row_align, (rows // row_align) * row_align)
    if rows >= 128:
        rows = (rows // 128) * 128   # unmasked, lane-dense output stores
    return rows


def _canon_alpha(alpha, c):
    # Mirror the PyTorch module's __init__ handling of alpha.
    if alpha is None:
        return None
    if isinstance(alpha, (float, int)) and not isinstance(alpha, bool):
        return jnp.array([alpha, 1.0 - alpha], dtype=jnp.float32)
    return jnp.asarray(alpha, dtype=jnp.float32)


def focal_loss(logits, targets, alpha=None, gamma=0, reduction=True, tile_n=None):
    """logits: (N, C) f32/bf16, targets: (N,) int, alpha: None | scalar | (C,).

    reduction=True -> scalar mean loss; reduction=False -> (N,) per-sample loss.
    """
    n, c = logits.shape
    itemsize = jnp.dtype(logits.dtype).itemsize
    row_align = 16 if itemsize < 4 else 8

    targets = targets.astype(jnp.int32)
    alpha_arr = _canon_alpha(alpha, c)
    # Per-row alpha gather in the wrapper (O(N) bytes) -> kernel avoids a second
    # (TN, C) select + cross-lane reduce.
    if alpha_arr is None:
        at = jnp.ones((n,), dtype=jnp.float32)
    else:
        assert alpha_arr.shape == (c,), "alpha must have one weight per class"
        at = jnp.take(alpha_arr, targets, axis=0).astype(jnp.float32)

    if tile_n is None:
        tile_n = _pick_tile_n(n, c, itemsize, row_align)
    tile_n = max(row_align, (int(tile_n) // row_align) * row_align)
    num_tiles = -(-n // tile_n)

    t2d = targets.reshape(n, 1)
    at2d = at.reshape(n, 1)

    if reduction:
        out_shape = jax.ShapeDtypeStruct((num_tiles, 1, 1), jnp.float32)
        out_spec = pl.BlockSpec((1, 1, 1), lambda i: (i, 0, 0))
    else:
        out_shape = jax.ShapeDtypeStruct((num_tiles, 1, tile_n), jnp.float32)
        out_spec = pl.BlockSpec((1, 1, tile_n), lambda i: (i, 0, 0))

    kernel = functools.partial(
        _focal_loss_kernel, gamma=gamma, n_total=n, tile_n=tile_n,
        reduce_tile=bool(reduction))

    # VMEM accounting: double-buffered logits blocks + live f32 temporaries +
    # lane-padded (tile_n, 128) targets/alpha blocks + small output blocks.
    need = (2 * tile_n * c * itemsize
            + 4 * tile_n * c * 4
            + 2 * 2 * tile_n * 128 * 4
            + 2 * 8 * max(tile_n, 128) * 4)
    vmem_cap = _vmem_capacity_bytes()
    vmem_limit = int(min(max(need + (8 << 20), 24 << 20), (vmem_cap * 3) // 4))

    out = pl.pallas_call(
        kernel,
        out_shape=out_shape,
        grid_spec=pltpu.PrefetchScalarGridSpec(
            num_scalar_prefetch=0,
            grid=(num_tiles,),
            in_specs=[
                pl.BlockSpec((tile_n, c), lambda i: (i, 0)),   # logits tile
                pl.BlockSpec((tile_n, 1), lambda i: (i, 0)),   # targets
                pl.BlockSpec((tile_n, 1), lambda i: (i, 0)),   # alpha[targets]
            ],
            out_specs=out_spec,
        ),
        compiler_params=pltpu.CompilerParams(
            dimension_semantics=("parallel",),    # no carried state across tiles
            vmem_limit_bytes=vmem_limit,
        ),
    )(logits, t2d, at2d)

    if reduction:
        # Ragged-tail rows were zeroed in-kernel; divide by the true N.
        return jnp.sum(out) / jnp.float32(n)
    return out.reshape(num_tiles * tile_n)[:n]


def _focal_loss_ref(logits, targets, alpha, gamma, reduction=True):
    # Pure-JAX reference mirroring the PyTorch module.
    logits = logits.astype(jnp.float32)
    logp = jax.nn.log_softmax(logits, axis=-1)
    logpt = -jnp.take_along_axis(logp, targets[:, None].astype(jnp.int32), axis=-1)[:, 0]
    pt = jnp.exp(-logpt)
    at = jnp.ones_like(logpt) if alpha is None else alpha[targets]
    loss = (1.0 - pt) ** gamma * (logpt * at)
    return jnp.mean(loss) if reduction else loss


if __name__ == "__main__":
    key = jax.random.PRNGKey(0)
    k1, k2, k3, k4, k5, k6 = jax.random.split(key, 6)

    gamma = 2
    alpha = [0.1, 0.2, 0.3, 0.4]                        # per-class, as in __init__
    alpha_arr = jnp.asarray(alpha, dtype=jnp.float32)

    # Case 1: tile-aligned N, mean reduction (the module's default path).
    N, C = 8, 4
    logits = jax.random.normal(k1, (N, C), dtype=jnp.float32)
    targets = jax.random.randint(k2, (N,), 0, C, dtype=jnp.int32)
    out = jax.block_until_ready(focal_loss(logits, targets, alpha, gamma=gamma))
    ref = _focal_loss_ref(logits, targets, alpha_arr, gamma)
    assert jnp.allclose(out, ref, rtol=1e-5, atol=1e-5), (out, ref)

    # Case 2: ragged N (masked last tile) + reduction=False lane-dense path.
    N2 = 10
    logits2 = jax.random.normal(k3, (N2, C), dtype=jnp.float32)
    targets2 = jax.random.randint(k4, (N2,), 0, C, dtype=jnp.int32)
    out2 = jax.block_until_ready(focal_loss(logits2, targets2, alpha, gamma=gamma))
    ref2 = _focal_loss_ref(logits2, targets2, alpha_arr, gamma)
    assert jnp.allclose(out2, ref2, rtol=1e-5, atol=1e-5), (out2, ref2)

    out2_vec = jax.block_until_ready(
        focal_loss(logits2, targets2, alpha, gamma=gamma, reduction=False))
    ref2_vec = _focal_loss_ref(logits2, targets2, alpha_arr, gamma, reduction=False)
    assert jnp.allclose(out2_vec, ref2_vec, rtol=1e-5, atol=1e-5)

    # Case 3: gamma=0, alpha=None (plain mean CE), bf16 through the DMA path.
    N3 = 16
    logits3 = jax.random.normal(k5, (N3, C), dtype=jnp.float32).astype(jnp.bfloat16)
    targets3 = jax.random.randint(k6, (N3,), 0, C, dtype=jnp.int32)
    out3 = jax.block_until_ready(focal_loss(logits3, targets3, None, gamma=0))
    ref3 = _focal_loss_ref(logits3, targets3, None, 0)
    assert jnp.allclose(out3, ref3, rtol=1e-4, atol=1e-4), (out3, ref3)

    print("KERNEL_OK")
</pallas_src>

<mosaic_0001>
module attributes {stable_mosaic.version = 11 : i64} {
  func.func @_focal_loss_kernel(%arg0: i32, %arg1: memref<8x4xf32, #tpu.memory_space<vmem>>, %arg2: memref<8x1xi32, #tpu.memory_space<vmem>>, %arg3: memref<8x1xf32, #tpu.memory_space<vmem>>, %arg4: memref<1x1x1xf32, #tpu.memory_space<vmem>>) attributes {dimension_semantics = [#tpu.dimension_semantics<parallel>], iteration_bounds = array<i64: 1>, scalar_prefetch = 0 : i64, scratch_operands = 0 : i64, tpu.core_type = #tpu.core_type<tc>, window_params = [{transform_indices = @transform_0, window_bounds = array<i64: 8, 4>}, {transform_indices = @transform_1, window_bounds = array<i64: 8, 1>}, {transform_indices = @transform_2, window_bounds = array<i64: 8, 1>}, {transform_indices = @transform_3, window_bounds = array<i64: 1, 1, 1>}]} {
    %c0 = arith.constant 0 : index
    %c0_0 = arith.constant 0 : index
    %0 = vector.load %arg1[%c0, %c0_0] : memref<8x4xf32, #tpu.memory_space<vmem>>, vector<8x4xf32>
    %c0_1 = arith.constant 0 : index
    %c0_2 = arith.constant 0 : index
    %1 = vector.load %arg2[%c0_1, %c0_2] : memref<8x1xi32, #tpu.memory_space<vmem>>, vector<8x1xi32>
    %c0_3 = arith.constant 0 : index
    %c0_4 = arith.constant 0 : index
    %2 = vector.load %arg3[%c0_3, %c0_4] : memref<8x1xf32, #tpu.memory_space<vmem>>, vector<8x1xf32>
    %cst = arith.constant dense<0xFF800000> : vector<8xf32>
    %3 = vector.multi_reduction <maximumf>, %0, %cst [1] : vector<8x4xf32> to vector<8xf32>
    %4 = vector.shape_cast %3 : vector<8xf32> to vector<8x1xf32>
    %5 = vector.broadcast %4 : vector<8x1xf32> to vector<8x4xf32>
    %6 = arith.subf %0, %5 : vector<8x4xf32>
    %7 = math.exp %6 : vector<8x4xf32>
    %cst_5 = arith.constant dense<0.000000e+00> : vector<8xf32>
    %8 = vector.multi_reduction <add>, %7, %cst_5 [1] : vector<8x4xf32> to vector<8xf32>
    %9 = vector.shape_cast %8 : vector<8xf32> to vector<8x1xf32>
    %10 = tpu.iota {dimensions = array<i32: 1>} : vector<8x4xi32>
    %11 = vector.broadcast %1 : vector<8x1xi32> to vector<8x4xi32>
    %12 = arith.cmpi eq, %10, %11 : vector<8x4xi32>
    %cst_6 = arith.constant 0.000000e+00 : f32
    %13 = vector.broadcast %cst_6 : f32 to vector<8x4xf32>
    %14 = arith.select %12, %6, %13 : vector<8x4xi1>, vector<8x4xf32>
    %cst_7 = arith.constant dense<0.000000e+00> : vector<8xf32>
    %15 = vector.multi_reduction <add>, %14, %cst_7 [1] : vector<8x4xf32> to vector<8xf32>
    %16 = vector.shape_cast %15 : vector<8xf32> to vector<8x1xf32>
    %17 = math.log %9 : vector<8x1xf32>
    %18 = arith.subf %17, %16 : vector<8x1xf32>
    %19 = math.exp %16 : vector<8x1xf32>
    %20 = tpu.reciprocal %9 : vector<8x1xf32> -> vector<8x1xf32>
    %21 = arith.mulf %19, %20 : vector<8x1xf32>
    %cst_8 = arith.constant 1.000000e+00 : f32
    %22 = vector.broadcast %cst_8 : f32 to vector<8x1xf32>
    %23 = arith.subf %22, %21 : vector<8x1xf32>
    %cst_9 = arith.constant 0.000000e+00 : f32
    %24 = vector.broadcast %cst_9 : f32 to vector<8x1xf32>
    %25 = arith.maximumf %23, %24 : vector<8x1xf32>
    %26 = arith.mulf %25, %25 : vector<8x1xf32>
    %27 = arith.mulf %2, %18 : vector<8x1xf32>
    %28 = arith.mulf %26, %27 : vector<8x1xf32>
    %c8_i32 = arith.constant 8 : i32
    %29 = arith.muli %arg0, %c8_i32 : i32
    %30 = tpu.iota {dimensions = array<i32: 0>} : vector<8x1xi32>
    %31 = vector.broadcast %29 : i32 to vector<8x1xi32>
    %32 = arith.addi %31, %30 : vector<8x1xi32>
    %c8_i32_10 = arith.constant 8 : i32
    %33 = vector.broadcast %c8_i32_10 : i32 to vector<8x1xi32>
    %34 = arith.cmpi slt, %32, %33 : vector<8x1xi32>
    %cst_11 = arith.constant 0.000000e+00 : f32
    %35 = vector.broadcast %cst_11 : f32 to vector<8x1xf32>
    %36 = arith.select %34, %28, %35 : vector<8x1xi1>, vector<8x1xf32>
    %37 = vector.shape_cast %36 : vector<8x1xf32> to vector<1x8x1xf32>
    %cst_12 = arith.constant dense<0.000000e+00> : vector<1xf32>
    %38 = vector.multi_reduction <add>, %37, %cst_12 [1, 2] : vector<1x8x1xf32> to vector<1xf32>
    %39 = vector.shape_cast %38 : vector<1xf32> to vector<1x1x1xf32>
    %40 = vector.extract %39[0, 0, 0] : f32 from vector<1x1x1xf32>
    %41 = vector.broadcast %40 : f32 to vector<1x1xf32>
    %42 = vector.shape_cast %41 : vector<1x1xf32> to vector<1x1x1xf32>
    %c0_13 = arith.constant 0 : index
    %c0_14 = arith.constant 0 : index
    %c0_15 = arith.constant 0 : index
    %43 = vector.load %arg4[%c0_13, %c0_14, %c0_15] : memref<1x1x1xf32, #tpu.memory_space<vmem>>, vector<1x1x1xf32>
    tpu.vector_store %arg4[%c0_13, %c0_14, %c0_15], %42 {strides = array<i32>} : memref<1x1x1xf32, #tpu.memory_space<vmem>>, vector<1x1x1xf32>,
    return
  }
  func.func @transform_0(%arg0: i32) -> (i32, i32) {
    %c0_i32 = arith.constant 0 : i32
    %c0_i32_0 = arith.constant 0 : i32
    return %arg0, %c0_i32 : i32, i32
  }
  func.func @transform_1(%arg0: i32) -> (i32, i32) {
    %c0_i32 = arith.constant 0 : i32
    %c0_i32_0 = arith.constant 0 : i32
    return %arg0, %c0_i32 : i32, i32
  }
  func.func @transform_2(%arg0: i32) -> (i32, i32) {
    %c0_i32 = arith.constant 0 : i32
    %c0_i32_0 = arith.constant 0 : i32
    return %arg0, %c0_i32 : i32, i32
  }
  func.func @transform_3(%arg0: i32) -> (i32, i32, i32) {
    %c0_i32 = arith.constant 0 : i32
    %c0_i32_0 = arith.constant 0 : i32
    %c0_i32_1 = arith.constant 0 : i32
    return %arg0, %c0_i32, %c0_i32_0 : i32, i32, i32
  }
}

</mosaic_0001>

<llo_original>
// kernel: tpu_custom_call.1
$region0: #{tpu_custom_call.1}
  #allocation0 [shape = 'u32[]', space=smem, size = 0x4, offset = 0x4, fixed_abs, tag = 'smem constant byte address 0x4 - core index']
  #allocation1 [shape = 'u32[144,128]{1,0:T(1,128)}', space=vmem, size = 0x12000, scoped, tag = 'internal scratch']
  %s0 = inlined_call_operand.vmem [shape: f32[8,4], index: 0, kind: input, shape index: {}]
  %s1 = inlined_call_operand.vmem [shape: s32[8,1], index: 1, kind: input, shape index: {}]
  %s2 = inlined_call_operand.vmem [shape: f32[8,1], index: 2, kind: input, shape index: {}]
  %s3 = inlined_call_operand.hbm [shape: f32[1,1,1], index: 3, kind: output, shape index: {}]
  %s4 = sld [smem:[#allocation0]]
  $region22: #{tpu_custom_call.1} parent=0
    _
  %s6 = ssub.s32 1, %s4
  %s7 = scalar_select 0, %s6, %s4
  $region1: #{tpu_custom_call.1} parent=0
    #allocation2 [shape = 'u8[512]{0}', space=vmem, size = 0x400, scoped, tag = 'output window, operand 0, single buffered']
    #allocation3 [shape = 's32[1]{0}', space=sflag, size = 0x4, scoped, tag = 'scoped memory for tpu_custom_call.1']
    %8 = vsyncpa [#allocation3], 0
    // Predicated region
    $region2: #{tpu_custom_call.1} parent=1 // pred_check
      _
    $region3: #{tpu_custom_call.1} parent=1 // pred_check_branch
      %10 = sbr.rel (0) target = $region5
    $region4: #{tpu_custom_call.1} parent=1 // pred_region
      _
    $region5: #{tpu_custom_call.1} parent=1 // pred_fallthru
      _
    // Predicated region
    $region6: #{tpu_custom_call.1} parent=1 // pred_check
      _
    $region7: #{tpu_custom_call.1} parent=1 // pred_check_branch
      %12 = sbr.rel (0) target = $region9
    $region8: #{tpu_custom_call.1} parent=1 // pred_region
      _
    $region9: #{tpu_custom_call.1} parent=1 // pred_fallthru
      _
    // Predicated region
    $region10: #{tpu_custom_call.1} parent=1 // pred_check
      _
    $region11: #{tpu_custom_call.1} parent=1 // pred_check_branch
      %14 = sbr.rel (0) target = $region13
    $region12: #{tpu_custom_call.1} parent=1 // pred_region
      _
    $region13: #{tpu_custom_call.1} parent=1 // pred_fallthru
      _
    %v15 = vld [vmem:[%s0] sm:$0xff]
    %v16 = vld [vmem:[%s1] sm:$0xff]
    %v17 = vld [vmem:[%s2] sm:$0xff]
    %vm18 = vcmask 31744
    %v19 = vsel %vm18, %v15, -inf
    %20 = vmax.xlane.f32.xlu0 %v19
    %v21 = vpop.xlane.xlu0 %20
    %v22 = vsub.f32 %v15, %v21
    %v23 = vmul.f32 %v22, 1.442695
    %v24 = vpow.pop %v23
    %v25 = vsel %vm18, %v24, 0.0
    %26 = vadd.xlane.f32.xlu0 %v25
    %v27 = vpop.xlane.xlu0 %26
    %v28 = vlaneseq
    %v29 = vand.u32 %v28, 127
    %30 = vset.pattern.permute.xlu0 0
    %31 = vperm.xlu0 %30, %v16
    %v32 = vpop.permute.xlu0 %31
    %vm33 = vcmp.eq.s32.totalorder %v29, %v32
    %v34 = vsel %vm33, %v22, 0.0
    %v35 = vsel %vm18, %v34, 0.0
    %36 = vadd.xlane.f32.xlu0 %v35
    %v37 = vpop.xlane.xlu0 %36
    %v38 = vlog2.pop %v27
    %v39 = vmul.f32 %v38, 0.6931472
    %v40 = vsub.f32 %v39, %v37
    %v41 = vmul.f32 %v37, 1.442695
    %v42 = vpow.pop %v41
    %v43 = vrcp.pop %v27
    %v44 = vmul.f32 %v42, %v43
    %v45 = vsub.f32 1.0, %v44
    %v46 = vmax.f32 %v45, 0.0
    %v47 = vmul.f32 %v46, %v46
    %v48 = vmul.f32 %v17, %v40
    %v49 = vmul.f32 %v47, %v48
    %s50 = smul.u32 0, 8
    %v51 = vlaneseq
    %v52 = vshrl.u32 %v51, 7
    %v53 = vstv %s50
    %v54 = vadd.s32 %v53, %v52
    %vm55 = vcmp.lt.s32.totalorder %v54, 8
    %v56 = vsel %vm55, %v49, 0.0
    %vm57 = vcmask 7168
    %v58 = vsel %vm57, %v56, 0.0
    %59 = vadd.xlane.f32.xlu0 %v58
    %v60 = vpop.xlane.xlu0 %59
    %v61 = vrot.slane %v60, 4
    %v62 = vadd.f32 %v60, %v61
    %v63 = vrot.slane %v62, 2
    %v64 = vadd.f32 %v62, %v63
    %v65 = vrot.slane %v64, 1
    %v66 = vadd.f32 %v64, %v65
    %s67 = vtos %v66
    %v68 = vstv %s67
    %vm69 = vcmask 0
    %70 = vst.msk [vmem:[#allocation2] sm:$0x1] %vm69, %v68
    // Predicated region
    $region14: #{tpu_custom_call.1} parent=1 // pred_check
      _
    $region15: #{tpu_custom_call.1} parent=1 // pred_check_branch
      %72 = sbr.rel (0) target = $region17
    $region16: #{tpu_custom_call.1} parent=1 // pred_region
      %s74 = ssub.s32 16, 16
      %75 = vsyncadd [#allocation3], %s74
      %s77 = sshll.u32 [#allocation2], 4
      %s78 = int_to_ptr.vmem [resolvable:$true] %s77
      %80 = dma.vmem_to_hbm [thread:$0]  %s78, 16, %s3, [#allocation3]
    $region17: #{tpu_custom_call.1} parent=1 // pred_fallthru
      _
    // Predicated region
    $region18: #{tpu_custom_call.1} parent=1 // pred_check
      _
    $region19: #{tpu_custom_call.1} parent=1 // pred_check_branch
      %82 = sbr.rel (0) target = $region21
    $region20: #{tpu_custom_call.1} parent=1 // pred_region
      %83 = dma.done [#allocation3], 16
    $region21: #{tpu_custom_call.1} parent=1 // pred_fallthru
      _
    %84 = vsyncpa [#allocation3], 1

</llo_original>
